<compile_context>
chip_gen: v5e
topology: v5e:2x2
jax: 0.10.0
libtpu: 0.0.40
codegen_flags: <defaults>
</compile_context>

<pallas_src>
import functools

import jax
import jax.numpy as jnp
from jax.experimental import pallas as pl
from jax.experimental.pallas import tpu as pltpu


def _round_up(x, m):
    return (x + m - 1) // m * m


def _cdiv(a, b):
    return (a + b - 1) // b


def _interp_matrix(out_size, in_size, dtype=jnp.float32):
    """1-D bilinear weights, align_corners=True (PyTorch F.interpolate)."""
    if out_size == 1:
        return jnp.zeros((1, in_size), dtype).at[0, 0].set(1.0)
    src = jnp.arange(out_size, dtype=jnp.float32) * (in_size - 1) / (out_size - 1)
    lo = jnp.clip(jnp.floor(src).astype(jnp.int32), 0, in_size - 1)
    hi = jnp.clip(lo + 1, 0, in_size - 1)
    frac = src - lo.astype(jnp.float32)
    rows = jnp.arange(out_size)
    m = jnp.zeros((out_size, in_size), jnp.float32)
    m = m.at[rows, lo].add(1.0 - frac)
    m = m.at[rows, hi].add(frac)
    return m.astype(dtype)


def _plan(x_shapes, out_hw, tr_max=256, tk_max=512):
    """Tile plan shared by the fold-matrix builder and the kernel wrapper."""
    ho, _ = out_hw
    k_sizes = [c * h for (_, c, h, _) in x_shapes]
    w_sizes = [w for (_, _, _, w) in x_shapes]
    k_raw = max(k_sizes)
    tk = min(tk_max, _round_up(k_raw, 128))          # K tile (mult of 128)
    k_pad = _round_up(k_raw, tk)
    nr = _cdiv(ho, tr_max)                           # number of row tiles
    tr = _round_up(_cdiv(ho, nr), 8)                 # row tile (mult of 8)
    ho_pad = tr * nr
    return dict(tk=tk, k_pad=k_pad, tr=tr, nr=nr, ho_pad=ho_pad,
                w_pad=max(w_sizes),
                nk=tuple(_cdiv(k, tk) for k in k_sizes))


# ------------------------------ kernels ------------------------------------


def _score_resize_kernel(nk_ref, x_ref, bm_ref, aw_ref, bias_ref, o_ref, acc_ref):
    # nk_ref:   (S,)  SMEM scalar-prefetch, valid K tiles per scale
    # x_ref:    (1, N, tk, W_pad)   feature block (natural layout, K-tiled)
    # bm_ref:   (1, tr, tk)         conv-folded row-resize matrix block
    # aw_ref:   (1, W_pad, Wo)      column-resize matrix A_w^T
    # bias_ref: (S,)  SMEM          per-scale conv bias
    # o_ref:    (1, N, tr, Wo)
    # acc_ref:  (N, tr, W_pad) f32  VMEM accumulator (persists over k)
    s = pl.program_id(1)
    k = pl.program_id(2)
    n_batch = acc_ref.shape[0]

    @pl.when(k == 0)
    def _init():
        acc_ref[...] = jnp.zeros_like(acc_ref)

    @pl.when(k < nk_ref[s])
    def _accumulate():
        b_blk = bm_ref[0]                                     # (tr, tk)
        for n in range(n_batch):                              # N is small
            acc_ref[n] += jnp.dot(b_blk, x_ref[0, n],
                                  preferred_element_type=jnp.float32)

    @pl.when(k == pl.num_programs(2) - 1)
    def _finalize():
        aw = aw_ref[0]                                        # (W_pad, Wo)
        bias = bias_ref[s]
        for n in range(n_batch):
            o_ref[0, n] = (jnp.dot(acc_ref[n], aw,
                                   preferred_element_type=jnp.float32)
                           + bias).astype(o_ref.dtype)


def _conv1x1_kernel(x_ref, w_ref, bias_ref, o_ref):
    # x_ref: (N, C, H*W) native layout; w_ref: (1, C); bias_ref: (1,) SMEM
    # o_ref: (N, 1, H*W)
    n_batch = x_ref.shape[0]
    w = w_ref[...]
    b = bias_ref[0]
    for n in range(n_batch):
        o_ref[n] = (jnp.dot(w, x_ref[n], preferred_element_type=jnp.float32)
                    + b).astype(o_ref.dtype)


# ------------------------------ index maps ----------------------------------


def _x_map(r, s, k, nk):
    return (s, 0, jnp.minimum(k, nk[s] - 1), 0)   # clamp: no DMA for padding


def _bm_map(r, s, k, nk):
    return (s, r, jnp.minimum(k, nk[s] - 1))


def _aw_map(r, s, k, nk):
    return (s, 0, 0)


def _out_map(r, s, k, nk):
    return (s, 0, r, 0)


# ------------------------------ wrappers ------------------------------------


def _build_fold(weights, biases, x_shapes, x_dtype, out_hw):
    """Precompute (cached) fold matrices: B_s = w_s (x) A_h, and A_w^T."""
    ho, wo = out_hw
    plan = _plan(x_shapes, out_hw)
    s_num = len(x_shapes)
    bm = jnp.zeros((s_num, plan["ho_pad"], plan["k_pad"]), jnp.float32)
    awt = jnp.zeros((s_num, plan["w_pad"], wo), jnp.float32)
    for i, (_, c, h, w) in enumerate(x_shapes):
        a_h = _interp_matrix(ho, h)                           # (Ho, H)
        a_w = _interp_matrix(wo, w)                           # (Wo, W)
        wv = weights[i].reshape(c).astype(jnp.float32)
        fold = jnp.einsum("c,ph->pch", wv, a_h).reshape(ho, c * h)
        bm = bm.at[i, :ho, : c * h].set(fold)
        awt = awt.at[i, :w, :].set(a_w.T)
    nk = jnp.asarray(plan["nk"], jnp.int32)
    bias = jnp.concatenate([b.reshape(1) for b in biases]).astype(jnp.float32)
    cdt = jnp.dtype(x_dtype)
    # Stream the fold matrices in the input dtype (bf16 halves HBM bytes when
    # the features are bf16); accumulation stays f32 in the kernel.
    return bm.astype(cdt), awt.astype(cdt), nk, bias


@functools.partial(jax.jit, static_argnums=(5,))
def _forward_resize(xs, bm, awt, nk, bias, out_hw):
    """xs: tuple of (N, C_i, H_i, W_i). Returns (S, N, Ho_pad, Wo) float32."""
    ho, wo = out_hw
    shapes = tuple(x.shape for x in xs)
    plan = _plan(shapes, out_hw)
    s_num = len(xs)
    n = shapes[0][0]
    cdt = jnp.result_type(*(x.dtype for x in xs))

    tr, tk = plan["tr"], plan["tk"]
    k_pad, w_pad, ho_pad = plan["k_pad"], plan["w_pad"], plan["ho_pad"]

    # Stack scales into one zero-padded buffer in their natural (N, C*H, W)
    # layout (free reshape, no transpose).  Padded K/W regions are zero and
    # never touched by the MXU thanks to the clamped index_map + pl.when.
    x_pad = jnp.zeros((s_num, n, k_pad, w_pad), cdt)
    for i, x in enumerate(xs):
        _, c, h, w = x.shape
        x_pad = x_pad.at[i, :, : c * h, :w].set(
            x.reshape(n, c * h, w).astype(cdt))

    grid = (ho_pad // tr, s_num, k_pad // tk)

    itemsize = jnp.dtype(cdt).itemsize
    est = (2 * n * tk * w_pad * itemsize        # x block, double-buffered
           + 2 * tr * tk * itemsize             # B block
           + 2 * w_pad * wo * itemsize          # A_w^T block
           + 2 * n * tr * wo * 4                # out block
           + n * tr * w_pad * 4)                # f32 accumulator scratch
    vmem_limit = int(min(48 * 2 ** 20, max(32 * 2 ** 20, 3 * est)))

    return pl.pallas_call(
        _score_resize_kernel,
        out_shape=jax.ShapeDtypeStruct((s_num, n, ho_pad, wo), jnp.float32),
        grid_spec=pltpu.PrefetchScalarGridSpec(
            num_scalar_prefetch=1,
            grid=grid,
            in_specs=[
                pl.BlockSpec((1, n, tk, w_pad), _x_map),
                pl.BlockSpec((1, tr, tk), _bm_map),
                pl.BlockSpec((1, w_pad, wo), _aw_map),
                pl.BlockSpec(memory_space=pltpu.MemorySpace.SMEM),
            ],
            out_specs=pl.BlockSpec((1, n, tr, wo), _out_map),
            scratch_shapes=[pltpu.VMEM((n, tr, w_pad), jnp.float32)],
        ),
        compiler_params=pltpu.CompilerParams(
            dimension_semantics=("parallel", "arbitrary", "arbitrary"),
            vmem_limit_bytes=vmem_limit,
        ),
    )(nk, x_pad, bm, awt, bias)


@jax.jit
def _conv1x1(x, w, bias):
    """x_size=None path: 1x1 conv in native (N, C, H*W) layout, no padding."""
    n, c, h, wd = x.shape
    hw = h * wd
    x3 = x.reshape(n, c, hw)
    out = pl.pallas_call(
        _conv1x1_kernel,
        out_shape=jax.ShapeDtypeStruct((n, 1, hw), jnp.float32),
        grid=(1,),
        in_specs=[
            pl.BlockSpec((n, c, hw), lambda i: (0, 0, 0)),
            pl.BlockSpec((1, c), lambda i: (0, 0)),
            pl.BlockSpec(memory_space=pltpu.MemorySpace.SMEM),
        ],
        out_specs=pl.BlockSpec((n, 1, hw), lambda i: (0, 0, 0)),
    )(x3, w.reshape(1, c).astype(x.dtype), bias.astype(jnp.float32))
    return out.reshape(n, 1, h, wd)


class ScoreLayersPallas:
    """Pallas port of ScoreLayers: one 1x1 conv (C_i -> 1) per feature map,
    plus optional bilinear resize to x_size[2:] (align_corners=True).
    The resize path runs all scales in a single fused pallas_call."""

    def __init__(self, channel_list, key):
        self.channel_list = list(channel_list)
        self.weights, self.biases = [], []
        for i, c in enumerate(channel_list):
            kw, kb = jax.random.split(jax.random.fold_in(key, i))
            bound = 1.0 / (c ** 0.5)   # matches PyTorch Conv2d default init scale
            self.weights.append(
                jax.random.uniform(kw, (1, c, 1, 1), jnp.float32, -bound, bound))
            self.biases.append(
                jax.random.uniform(kb, (1,), jnp.float32, -bound, bound))
        self._fold_cache = {}

    def __call__(self, xs, x_size=None):
        xs = tuple(xs)
        n = xs[0].shape[0]

        if x_size is None:
            return [_conv1x1(x, w, b)
                    for x, w, b in zip(xs, self.weights, self.biases)]

        ho, wo = int(x_size[2]), int(x_size[3])
        shapes = tuple(x.shape for x in xs)
        cdt = jnp.result_type(*(x.dtype for x in xs))
        key = ((ho, wo), shapes, str(cdt))
        if key not in self._fold_cache:     # build fold matrices ONCE
            self._fold_cache[key] = _build_fold(
                self.weights, self.biases, shapes, cdt, (ho, wo))
        bm, awt, nk, bias = self._fold_cache[key]

        out = _forward_resize(xs, bm, awt, nk, bias, (ho, wo))
        return [out[i, :, :ho, :].reshape(n, 1, ho, wo) for i in range(len(xs))]


# ------------------------------ reference -----------------------------------


def _reference(xs, weights, biases, x_size=None):
    outs = []
    for x, w, b in zip(xs, weights, biases):
        y = jnp.einsum("nchw,oc->nohw", x, w.reshape(1, -1)) + b.reshape(1, 1, 1, 1)
        if x_size is not None:
            ho, wo = x_size[2], x_size[3]
            _, _, h, wd = y.shape
            ah = _interp_matrix(ho, h)
            aw = _interp_matrix(wo, wd)
            y = jnp.einsum("ph,nchw,qw->ncpq", ah, y, aw)
        outs.append(y)
    return outs


if __name__ == "__main__":
    key = jax.random.PRNGKey(0)
    channel_list = [4, 8, 16]
    spatial = [16, 8, 4]          # multi-scale feature maps, as in BPFINet
    batch = 2

    kx = jax.random.split(key, len(channel_list) + 1)
    xs = [
        jax.random.normal(kx[i + 1],
                          (batch, channel_list[i], spatial[i], spatial[i]),
                          jnp.float32)
        for i in range(len(channel_list))
    ]
    x_size = (batch, 1, 32, 32)   # target spatial size, like the original image

    model = ScoreLayersPallas(channel_list, kx[0])

    # resize path (the main BPFINet path)
    outs = model(list(xs), x_size=x_size)
    outs = [jax.block_until_ready(o) for o in outs]
    refs = _reference(xs, model.weights, model.biases, x_size=x_size)
    for o, r in zip(outs, refs):
        assert o.shape == (batch, 1, 32, 32), o.shape
        assert jnp.allclose(o, r, rtol=1e-2, atol=1e-2), float(jnp.max(jnp.abs(o - r)))

    # x_size=None path (conv-only, native layout, no padding)
    outs_noresize = model(list(xs), x_size=None)
    outs_noresize = [jax.block_until_ready(o) for o in outs_noresize]
    refs_noresize = _reference(xs, model.weights, model.biases, x_size=None)
    for o, r in zip(outs_noresize, refs_noresize):
        assert o.shape == r.shape, (o.shape, r.shape)
        assert jnp.allclose(o, r, rtol=1e-2, atol=1e-2), float(jnp.max(jnp.abs(o - r)))

    print("KERNEL_OK")
</pallas_src>

<mosaic_0001>
module attributes {stable_mosaic.version = 11 : i64} {
  func.func @_score_resize_kernel(%arg0: i32, %arg1: i32, %arg2: i32, %arg3: memref<3xi32, #tpu.memory_space<smem>>, %arg4: memref<1x2x128x16xf32, #tpu.memory_space<vmem>>, %arg5: memref<1x32x128xf32, #tpu.memory_space<vmem>>, %arg6: memref<1x16x32xf32, #tpu.memory_space<vmem>>, %arg7: memref<3xf32, #tpu.memory_space<smem>>, %arg8: memref<1x2x32x32xf32, #tpu.memory_space<vmem>>, %arg9: memref<2x32x16xf32, #tpu.memory_space<vmem>>) attributes {dimension_semantics = [#tpu.dimension_semantics<parallel>, #tpu.dimension_semantics<arbitrary>, #tpu.dimension_semantics<arbitrary>], iteration_bounds = array<i64: 1, 3, 1>, scalar_prefetch = 1 : i64, scratch_operands = 1 : i64, tpu.core_type = #tpu.core_type<tc>, window_params = [{transform_indices = @transform_0, window_bounds = array<i64: 1, 2, 128, 16>}, {transform_indices = @transform_1, window_bounds = array<i64: 1, 32, 128>}, {transform_indices = @transform_2, window_bounds = array<i64: 1, 16, 32>}, {transform_indices = @transform_3, window_bounds = array<i64: 3>}, {transform_indices = @transform_4, window_bounds = array<i64: 1, 2, 32, 32>}]} {
    %c0_i32 = arith.constant 0 : i32
    %0 = arith.cmpi eq, %arg2, %c0_i32 : i32
    %1 = arith.extui %0 : i1 to i32
    %c0_i32_0 = arith.constant 0 : i32
    %2 = arith.cmpi ne, %1, %c0_i32_0 : i32
    scf.if %2 {
      %cst = arith.constant 0.000000e+00 : f32
      %11 = vector.broadcast %cst : f32 to vector<2x32x16xf32>
      %c0 = arith.constant 0 : index
      %c0_4 = arith.constant 0 : index
      %c0_5 = arith.constant 0 : index
      %12 = vector.load %arg9[%c0, %c0_4, %c0_5] : memref<2x32x16xf32, #tpu.memory_space<vmem>>, vector<2x32x16xf32>
      tpu.vector_store %arg9[%c0, %c0_4, %c0_5], %11 {strides = array<i32>} : memref<2x32x16xf32, #tpu.memory_space<vmem>>, vector<2x32x16xf32>,
    } else {
    }
    %3 = arith.index_cast %arg1 : i32 to index
    %4 = memref.load %arg3[%3] : memref<3xi32, #tpu.memory_space<smem>>
    %5 = arith.cmpi slt, %arg2, %4 : i32
    %6 = arith.extui %5 : i1 to i32
    %c0_i32_1 = arith.constant 0 : i32
    %7 = arith.cmpi ne, %6, %c0_i32_1 : i32
    scf.if %7 {
      %c0 = arith.constant 0 : index
      %c0_4 = arith.constant 0 : index
      %c0_5 = arith.constant 0 : index
      %11 = vector.load %arg5[%c0, %c0_4, %c0_5] : memref<1x32x128xf32, #tpu.memory_space<vmem>>, vector<1x32x128xf32>
      %12 = vector.shape_cast %11 : vector<1x32x128xf32> to vector<32x128xf32>
      %c0_6 = arith.constant 0 : index
      %c0_7 = arith.constant 0 : index
      %c0_8 = arith.constant 0 : index
      %13 = vector.load %arg9[%c0_6, %c0_7, %c0_8] : memref<2x32x16xf32, #tpu.memory_space<vmem>>, vector<1x32x16xf32>
      %14 = vector.shape_cast %13 : vector<1x32x16xf32> to vector<32x16xf32>
      %c0_9 = arith.constant 0 : index
      %c0_10 = arith.constant 0 : index
      %c0_11 = arith.constant 0 : index
      %c0_12 = arith.constant 0 : index
      %15 = vector.load %arg4[%c0_9, %c0_10, %c0_11, %c0_12] : memref<1x2x128x16xf32, #tpu.memory_space<vmem>>, vector<1x1x128x16xf32>
      %16 = vector.shape_cast %15 : vector<1x1x128x16xf32> to vector<128x16xf32>
      %cst = arith.constant dense<0.000000e+00> : vector<32x16xf32>
      %17 = tpu.matmul %12, %16, %cst {dimension_numbers = #tpu.dot_dimension_numbers<[1], [0], [0], [1], [0, 0, 1, 1], [], []>} : vector<32x128xf32>, vector<128x16xf32>, vector<32x16xf32> -> vector<32x16xf32>
      %18 = arith.addf %14, %17 : vector<32x16xf32>
      %c0_13 = arith.constant 0 : index
      %c0_14 = arith.constant 0 : index
      %c0_15 = arith.constant 0 : index
      %19 = vector.load %arg9[%c0_13, %c0_14, %c0_15] : memref<2x32x16xf32, #tpu.memory_space<vmem>>, vector<1x32x16xf32>
      %20 = vector.shape_cast %19 : vector<1x32x16xf32> to vector<32x16xf32>
      %21 = vector.shape_cast %18 : vector<32x16xf32> to vector<1x32x16xf32>
      tpu.vector_store %arg9[%c0_13, %c0_14, %c0_15], %21 {strides = array<i32>} : memref<2x32x16xf32, #tpu.memory_space<vmem>>, vector<1x32x16xf32>,
      %c1 = arith.constant 1 : index
      %c0_16 = arith.constant 0 : index
      %c0_17 = arith.constant 0 : index
      %22 = vector.load %arg9[%c1, %c0_16, %c0_17] : memref<2x32x16xf32, #tpu.memory_space<vmem>>, vector<1x32x16xf32>
      %23 = vector.shape_cast %22 : vector<1x32x16xf32> to vector<32x16xf32>
      %c0_18 = arith.constant 0 : index
      %c1_19 = arith.constant 1 : index
      %c0_20 = arith.constant 0 : index
      %c0_21 = arith.constant 0 : index
      %24 = vector.load %arg4[%c0_18, %c1_19, %c0_20, %c0_21] : memref<1x2x128x16xf32, #tpu.memory_space<vmem>>, vector<1x1x128x16xf32>
      %25 = vector.shape_cast %24 : vector<1x1x128x16xf32> to vector<128x16xf32>
      %cst_22 = arith.constant dense<0.000000e+00> : vector<32x16xf32>
      %26 = tpu.matmul %12, %25, %cst_22 {dimension_numbers = #tpu.dot_dimension_numbers<[1], [0], [0], [1], [0, 0, 1, 1], [], []>} : vector<32x128xf32>, vector<128x16xf32>, vector<32x16xf32> -> vector<32x16xf32>
      %27 = arith.addf %23, %26 : vector<32x16xf32>
      %c1_23 = arith.constant 1 : index
      %c0_24 = arith.constant 0 : index
      %c0_25 = arith.constant 0 : index
      %28 = vector.load %arg9[%c1_23, %c0_24, %c0_25] : memref<2x32x16xf32, #tpu.memory_space<vmem>>, vector<1x32x16xf32>
      %29 = vector.shape_cast %28 : vector<1x32x16xf32> to vector<32x16xf32>
      %30 = vector.shape_cast %27 : vector<32x16xf32> to vector<1x32x16xf32>
      tpu.vector_store %arg9[%c1_23, %c0_24, %c0_25], %30 {strides = array<i32>} : memref<2x32x16xf32, #tpu.memory_space<vmem>>, vector<1x32x16xf32>,
    } else {
    }
    %c0_i32_2 = arith.constant 0 : i32
    %8 = arith.cmpi eq, %arg2, %c0_i32_2 : i32
    %9 = arith.extui %8 : i1 to i32
    %c0_i32_3 = arith.constant 0 : i32
    %10 = arith.cmpi ne, %9, %c0_i32_3 : i32
    scf.if %10 {
      %c0 = arith.constant 0 : index
      %c0_4 = arith.constant 0 : index
      %c0_5 = arith.constant 0 : index
      %11 = vector.load %arg6[%c0, %c0_4, %c0_5] : memref<1x16x32xf32, #tpu.memory_space<vmem>>, vector<1x16x32xf32>
      %12 = vector.shape_cast %11 : vector<1x16x32xf32> to vector<16x32xf32>
      %13 = arith.index_cast %arg1 : i32 to index
      %14 = memref.load %arg7[%13] : memref<3xf32, #tpu.memory_space<smem>>
      %c0_6 = arith.constant 0 : index
      %c0_7 = arith.constant 0 : index
      %c0_8 = arith.constant 0 : index
      %15 = vector.load %arg9[%c0_6, %c0_7, %c0_8] : memref<2x32x16xf32, #tpu.memory_space<vmem>>, vector<1x32x16xf32>
      %16 = vector.shape_cast %15 : vector<1x32x16xf32> to vector<32x16xf32>
      %cst = arith.constant dense<0.000000e+00> : vector<32x32xf32>
      %17 = tpu.matmul %16, %12, %cst {dimension_numbers = #tpu.dot_dimension_numbers<[1], [0], [0], [1], [0, 0, 1, 1], [], []>} : vector<32x16xf32>, vector<16x32xf32>, vector<32x32xf32> -> vector<32x32xf32>
      %18 = vector.broadcast %14 : f32 to vector<32x32xf32>
      %19 = arith.addf %17, %18 : vector<32x32xf32>
      %c0_9 = arith.constant 0 : index
      %c0_10 = arith.constant 0 : index
      %c0_11 = arith.constant 0 : index
      %c0_12 = arith.constant 0 : index
      %20 = vector.load %arg8[%c0_9, %c0_10, %c0_11, %c0_12] : memref<1x2x32x32xf32, #tpu.memory_space<vmem>>, vector<1x1x32x32xf32>
      %21 = vector.shape_cast %20 : vector<1x1x32x32xf32> to vector<32x32xf32>
      %22 = vector.shape_cast %19 : vector<32x32xf32> to vector<1x1x32x32xf32>
      tpu.vector_store %arg8[%c0_9, %c0_10, %c0_11, %c0_12], %22 {strides = array<i32>} : memref<1x2x32x32xf32, #tpu.memory_space<vmem>>, vector<1x1x32x32xf32>,
      %c1 = arith.constant 1 : index
      %c0_13 = arith.constant 0 : index
      %c0_14 = arith.constant 0 : index
      %23 = vector.load %arg9[%c1, %c0_13, %c0_14] : memref<2x32x16xf32, #tpu.memory_space<vmem>>, vector<1x32x16xf32>
      %24 = vector.shape_cast %23 : vector<1x32x16xf32> to vector<32x16xf32>
      %cst_15 = arith.constant dense<0.000000e+00> : vector<32x32xf32>
      %25 = tpu.matmul %24, %12, %cst_15 {dimension_numbers = #tpu.dot_dimension_numbers<[1], [0], [0], [1], [0, 0, 1, 1], [], []>} : vector<32x16xf32>, vector<16x32xf32>, vector<32x32xf32> -> vector<32x32xf32>
      %26 = vector.broadcast %14 : f32 to vector<32x32xf32>
      %27 = arith.addf %25, %26 : vector<32x32xf32>
      %c0_16 = arith.constant 0 : index
      %c1_17 = arith.constant 1 : index
      %c0_18 = arith.constant 0 : index
      %c0_19 = arith.constant 0 : index
      %28 = vector.load %arg8[%c0_16, %c1_17, %c0_18, %c0_19] : memref<1x2x32x32xf32, #tpu.memory_space<vmem>>, vector<1x1x32x32xf32>
      %29 = vector.shape_cast %28 : vector<1x1x32x32xf32> to vector<32x32xf32>
      %30 = vector.shape_cast %27 : vector<32x32xf32> to vector<1x1x32x32xf32>
      tpu.vector_store %arg8[%c0_16, %c1_17, %c0_18, %c0_19], %30 {strides = array<i32>} : memref<1x2x32x32xf32, #tpu.memory_space<vmem>>, vector<1x1x32x32xf32>,
    } else {
    }
    return
  }
  func.func @transform_0(%arg0: i32, %arg1: i32, %arg2: i32, %arg3: memref<3xi32, #tpu.memory_space<smem>>) -> (i32, i32, i32, i32) {
    %0 = arith.index_cast %arg1 : i32 to index
    %1 = memref.load %arg3[%0] : memref<3xi32, #tpu.memory_space<smem>>
    %c1_i32 = arith.constant 1 : i32
    %2 = arith.subi %1, %c1_i32 : i32
    %3 = arith.minsi %arg2, %2 : i32
    %c0_i32 = arith.constant 0 : i32
    %c0_i32_0 = arith.constant 0 : i32
    %c0_i32_1 = arith.constant 0 : i32
    return %arg1, %c0_i32, %3, %c0_i32_0 : i32, i32, i32, i32
  }
  func.func @transform_1(%arg0: i32, %arg1: i32, %arg2: i32, %arg3: memref<3xi32, #tpu.memory_space<smem>>) -> (i32, i32, i32) {
    %0 = arith.index_cast %arg1 : i32 to index
    %1 = memref.load %arg3[%0] : memref<3xi32, #tpu.memory_space<smem>>
    %c1_i32 = arith.constant 1 : i32
    %2 = arith.subi %1, %c1_i32 : i32
    %3 = arith.minsi %arg2, %2 : i32
    %c0_i32 = arith.constant 0 : i32
    return %arg1, %arg0, %3 : i32, i32, i32
  }
  func.func @transform_2(%arg0: i32, %arg1: i32, %arg2: i32, %arg3: memref<3xi32, #tpu.memory_space<smem>>) -> (i32, i32, i32) {
    %c0_i32 = arith.constant 0 : i32
    %c0_i32_0 = arith.constant 0 : i32
    %c0_i32_1 = arith.constant 0 : i32
    return %arg1, %c0_i32, %c0_i32_0 : i32, i32, i32
  }
  func.func @transform_3(%arg0: i32, %arg1: i32, %arg2: i32, %arg3: memref<3xi32, #tpu.memory_space<smem>>) -> i32 {
    %c0_i32 = arith.constant 0 : i32
    %c0_i32_0 = arith.constant 0 : i32
    return %c0_i32 : i32
  }
  func.func @transform_4(%arg0: i32, %arg1: i32, %arg2: i32, %arg3: memref<3xi32, #tpu.memory_space<smem>>) -> (i32, i32, i32, i32) {
    %c0_i32 = arith.constant 0 : i32
    %c0_i32_0 = arith.constant 0 : i32
    %c0_i32_1 = arith.constant 0 : i32
    return %arg1, %c0_i32, %arg0, %c0_i32_0 : i32, i32, i32, i32
  }
}

</mosaic_0001>

<llo_original>
// kernel: _forward_resize.1
$region0: #{_forward_resize.1}
  #allocation0 [shape = 'u32[]', space=smem, size = 0x4, offset = 0x4, fixed_abs, tag = 'smem constant byte address 0x4 - core index']
  #allocation1 [shape = 'u32[72,128]{1,0:T(1,128)}', space=vmem, size = 0x9000, scoped, tag = 'internal scratch']
  #allocation2 [shape = 'f32[2,32,16]{2,1,0:T(8,128)}', space=vmem, size = 0x8000, scoped, tag = 'scratch operand']
  #allocation3 [shape = 's32[1]{0}', space=sflag, size = 0x4, scoped, tag = 'scoped memory for _forward_resize.1']
  #allocation4 [shape = 'u8[512]{0}', space=smem, size = 0x200, scoped, tag = 'prefetched SMEM operand 0']
  %s0 = inlined_call_operand.vmem [shape: s32[3], index: 0, kind: input, shape index: {}]
  %s1 = inlined_call_operand.vmem [shape: f32[3,2,128,16], index: 1, kind: input, shape index: {}]
  %s2 = inlined_call_operand.vmem [shape: f32[3,32,128], index: 2, kind: input, shape index: {}]
  %s3 = inlined_call_operand.vmem [shape: f32[3,16,32], index: 3, kind: input, shape index: {}]
  %s4 = inlined_call_operand.vmem [shape: f32[3], index: 4, kind: input, shape index: {}]
  %s5 = inlined_call_operand.hbm [shape: f32[3,2,32,32], index: 5, kind: output, shape index: {}]
  %s6 = sld [smem:[#allocation0]]
  $region65: #{_forward_resize.1} parent=0
    _
  %s8 = ssub.s32 1, %s6
  %s9 = scalar_select 0, %s8, %s6
  %s11 = sshll.u32 %s0, 4
  %s12 = int_to_ptr.vmem [resolvable:$true] %s11
  %14 = dma.vmem_to_smem %s12, 16, [#allocation4], [#allocation3]
  %16 = dma.done [#allocation3], 16
  %17 = sfence
  $region1: #{_forward_resize.1} parent=0
    #allocation5 [shape = 'u8[512]{0}', space=smem, size = 0x200, scoped, tag = 'input window, operand 4, single buffered']
    #allocation6 [shape = 's32[2]{0}', space=sflag, size = 0x8, scoped, tag = 'scoped memory for _forward_resize.1']
    #allocation7 [shape = 's32[2]{0}', space=sflag, size = 0x8, scoped, tag = 'scoped memory for _forward_resize.1']
    #allocation8 [shape = 'u8[65536]{0}', space=vmem, size = 0x10000, scoped, tag = 'output window, operand 0']
    %18 = vsyncpa [#allocation7], 0
    %19 = vsyncpa [#allocation6], 0
    %s20 = scalar_lea.sflag [#allocation6], 1
    %21 = vsyncpa %s20, 0
    loop: start=0, step=1, limit=5
    $region2: #{_forward_resize.1} parent=1 // loop_pre_header
      _
    $region3: #{_forward_resize.1} parent=1 // loop_header
      %s23 = sphi 0, %s27
      %p24 = scmp.ge.s32.totalorder %s23, 5
      %s30 = sphi 0, %s49
      %s31 = sphi 0, %s45
      %s32 = sphi 0, %s41
      %s33 = sphi 0, %s30
      %s34 = sphi 0, %s31
      %s35 = sphi 0, %s32
      %s36 = sphi 0, %s33
      %s37 = sphi 0, %s34
      %s38 = sphi 0, %s35
      %s62 = sphi 0, %s64
      %s65 = sphi 0, %s62
      %s66 = sphi 0, %s65
      %s82 = sphi 0, %s66
      %s100 = sphi 0, %s102
      %s103 = sphi 0, %s100
      %s104 = sphi 0, %s103
      %s120 = sphi 0, %s104
      %s126 = sphi 0, %s128
      %s129 = sphi 0, %s126
      %s130 = sphi 0, %s129
      %s146 = sphi 0, %s130
      %s150 = sphi 0, %s150
      %s152 = sphi 0, %s150
      %s153 = sphi 0, %s152
      %s167 = sphi 0, %s153
      %s175 = sphi 0, %s177
      %s178 = sphi 0, %s175
      %s179 = sphi 0, %s178
      %s195 = sphi 0, %s179
    $region4: #{_forward_resize.1} parent=1 // loop_header_branch
      %26 = sbr.rel (%p24) target = $region8
    $region5: #{_forward_resize.1} parent=1 // loop_body
      %s28 = ssub.s32 %s23, 1
      %s29 = ssub.s32 %s23, 2
      %s39 = sadd.s32 1, %s32
      %p40 = scmp.ge.s32.totalorder %s39, 1
      %s41 = scalar_select %p40, 0, %s39
      %s42 = sadd.s32 1, %s31
      %s43 = scalar_select %p40, %s42, %s31
      %p44 = scmp.ge.s32.totalorder %s43, 3
      %s45 = scalar_select %p44, 0, %s43
      %s46 = sadd.s32 1, %s30
      %s47 = scalar_select %p44, %s46, %s30
      %p48 = scmp.ge.s32.totalorder %s47, 1
      %s49 = scalar_select %p48, 0, %s47
      %s50 = sld [smem:[#allocation4 + %s31]]
      %s51 = ssub.s32 %s50, 1
      %p52 = scmp.lt.s32.totalorder %s32, %s51
      %s53 = scalar_select %p52, %s32, %s51
      %s54 = sld [smem:[#allocation4 + %s45]]
      %s55 = ssub.s32 %s54, 1
      %p56 = scmp.lt.s32.totalorder %s41, %s55
      %s57 = scalar_select %p56, %s41, %s55
      %s58 = ssub.s32 %s31, %s45
      %s59 = ssub.s32 %s53, %s57
      %s60 = sor.u32 %s58, %s59
      %p61 = scmp.eq.s32.totalorder %s60, 0
      %s63 = sadd.s32 %s62, 1
      %s64 = scalar_select %p61, %s62, %s63
      %p67 = pneg %p61
      %p68 = scmp.eq.s32.totalorder %s23, 2
      %p69 = por %p67, %p68
      %p70 = scmp.ne.s32.totalorder %s62, %s65
      %p71 = scmp.eq.s32.totalorder %s23, 0
      %p72 = por %p70, %p71
      %p73 = scmp.ne.s32.totalorder %s62, %s65
      %p74 = scmp.eq.s32.totalorder %s28, 2
      %p75 = por %p73, %p74
      %p76 = scmp.ne.s32.totalorder %s65, %s66
      %p77 = scmp.eq.s32.totalorder %s28, 0
      %p78 = por %p76, %p77
      %p79 = scmp.ne.s32.totalorder %s65, %s66
      %p80 = scmp.eq.s32.totalorder %s29, 2
      %p81 = por %p79, %p80
      %p83 = scmp.ne.s32.totalorder %s66, %s82
      %p84 = scmp.eq.s32.totalorder %s29, 0
      %p85 = por %p83, %p84
      %s86 = sld [smem:[#allocation4 + %s31]]
      %s87 = ssub.s32 %s86, 1
      %p88 = scmp.lt.s32.totalorder %s32, %s87
      %s89 = scalar_select %p88, %s32, %s87
      %s90 = sld [smem:[#allocation4 + %s45]]
      %s91 = ssub.s32 %s90, 1
      %p92 = scmp.lt.s32.totalorder %s41, %s91
      %s93 = scalar_select %p92, %s41, %s91
      %s94 = ssub.s32 %s31, %s45
      %s95 = ssub.s32 %s30, %s49
      %s96 = sor.u32 %s94, %s95
      %s97 = ssub.s32 %s89, %s93
      %s98 = sor.u32 %s96, %s97
      %p99 = scmp.eq.s32.totalorder %s98, 0
      %s101 = sadd.s32 %s100, 1
      %s102 = scalar_select %p99, %s100, %s101
      %p105 = pneg %p99
      %p106 = scmp.eq.s32.totalorder %s23, 2
      %p107 = por %p105, %p106
      %p108 = scmp.ne.s32.totalorder %s100, %s103
      %p109 = scmp.eq.s32.totalorder %s23, 0
      %p110 = por %p108, %p109
      %p111 = scmp.ne.s32.totalorder %s100, %s103
      %p112 = scmp.eq.s32.totalorder %s28, 2
      %p113 = por %p111, %p112
      %p114 = scmp.ne.s32.totalorder %s103, %s104
      %p115 = scmp.eq.s32.totalorder %s28, 0
      %p116 = por %p114, %p115
      %p117 = scmp.ne.s32.totalorder %s103, %s104
      %p118 = scmp.eq.s32.totalorder %s29, 2
      %p119 = por %p117, %p118
      %p121 = scmp.ne.s32.totalorder %s104, %s120
      %p122 = scmp.eq.s32.totalorder %s29, 0
      %p123 = por %p121, %p122
      %s124 = ssub.s32 %s31, %s45
      %p125 = scmp.eq.s32.totalorder %s124, 0
      %s127 = sadd.s32 %s126, 1
      %s128 = scalar_select %p125, %s126, %s127
      %p131 = pneg %p125
      %p132 = scmp.eq.s32.totalorder %s23, 2
      %p133 = por %p131, %p132
      %p134 = scmp.ne.s32.totalorder %s126, %s129
      %p135 = scmp.eq.s32.totalorder %s23, 0
      %p136 = por %p134, %p135
      %p137 = scmp.ne.s32.totalorder %s126, %s129
      %p138 = scmp.eq.s32.totalorder %s28, 2
      %p139 = por %p137, %p138
      %p140 = scmp.ne.s32.totalorder %s129, %s130
      %p141 = scmp.eq.s32.totalorder %s28, 0
      %p142 = por %p140, %p141
      %p143 = scmp.ne.s32.totalorder %s129, %s130
      %p144 = scmp.eq.s32.totalorder %s29, 2
      %p145 = por %p143, %p144
      %p147 = scmp.ne.s32.totalorder %s130, %s146
      %p148 = scmp.eq.s32.totalorder %s29, 0
      %p149 = por %p147, %p148
      %s151 = sadd.s32 %s150, 1
      %p154 = scmp.eq.s32.totalorder %s23, 2
      %p155 = scmp.ne.s32.totalorder %s150, %s152
      %p156 = scmp.eq.s32.totalorder %s23, 0
      %p157 = por %p155, %p156
      %p158 = scmp.ne.s32.totalorder %s150, %s152
      %p159 = scmp.eq.s32.totalorder %s28, 2
      %p160 = por %p158, %p159
      %p161 = scmp.ne.s32.totalorder %s152, %s153
      %p162 = scmp.eq.s32.totalorder %s28, 0
      %p163 = por %p161, %p162
      %p164 = scmp.ne.s32.totalorder %s152, %s153
      %p165 = scmp.eq.s32.totalorder %s29, 2
      %p166 = por %p164, %p165
      %p168 = scmp.ne.s32.totalorder %s153, %s167
      %p169 = scmp.eq.s32.totalorder %s29, 0
      %p170 = por %p168, %p169
      %s171 = ssub.s32 %s31, %s45
      %s172 = ssub.s32 %s30, %s49
      %s173 = sor.u32 %s171, %s172
      %p174 = scmp.eq.s32.totalorder %s173, 0
      %s176 = sadd.s32 %s175, 1
      %s177 = scalar_select %p174, %s175, %s176
      %p180 = pneg %p174
      %p181 = scmp.eq.s32.totalorder %s23, 2
      %p182 = por %p180, %p181
      %p183 = scmp.ne.s32.totalorder %s175, %s178
      %p184 = scmp.eq.s32.totalorder %s23, 0
      %p185 = por %p183, %p184
      %p186 = scmp.ne.s32.totalorder %s175, %s178
      %p187 = scmp.eq.s32.totalorder %s28, 2
      %p188 = por %p186, %p187
      %p189 = scmp.ne.s32.totalorder %s178, %s179
      %p190 = scmp.eq.s32.totalorder %s28, 0
      %p191 = por %p189, %p190
      %p192 = scmp.ne.s32.totalorder %s178, %s179
      %p193 = scmp.eq.s32.totalorder %s29, 2
      %p194 = por %p192, %p193
      %p196 = scmp.ne.s32.totalorder %s179, %s195
      %p197 = scmp.eq.s32.totalorder %s29, 0
      %p198 = por %p196, %p197
      %p199 = scmp.le.s32.totalorder 1, %s23
      %p200 = scmp.lt.s32.totalorder %s23, 4
      %p201 = pnand %p199, %p200
      %p202 = pneg %p201
      // Predicated region
      $region9: #{_forward_resize.1} parent=5 // pred_check
        _
      $region10: #{_forward_resize.1} parent=5 // pred_check_branch
        %204 = sbr.rel (%p201) target = $region12
      $region11: #{_forward_resize.1} parent=5 // pred_region
        %s205 = ssub.s32 %s23, 1
        // Predicated region
        $region13: #{_forward_resize.1} parent=11 // pred_check
          %p206 = pneg %p163
        $region14: #{_forward_resize.1} parent=11 // pred_check_branch
          %208 = sbr.rel (%p206) target = $region16
        $region15: #{_forward_resize.1} parent=11 // pred_region
          %210 = vsyncadd [#allocation7], 0
          %s212 = sshll.u32 %s4, 4
          %s213 = int_to_ptr.vmem [resolvable:$true] %s212
          %215 = dma.vmem_to_smem %s213, 16, [#allocation5], [#allocation7]
        $region16: #{_forward_resize.1} parent=11 // pred_fallthru
          _
      $region12: #{_forward_resize.1} parent=5 // pred_fallthru
        _
      %p216 = scmp.lt.s32.totalorder %s23, 3
      // Predicated region
      $region17: #{_forward_resize.1} parent=5 // pred_check
        %p217 = pneg %p216
      $region18: #{_forward_resize.1} parent=5 // pred_check_branch
        %219 = sbr.rel (%p217) target = $region20
      $region19: #{_forward_resize.1} parent=5 // pred_region
        // Predicated region
        $region21: #{_forward_resize.1} parent=19 // pred_check
          %p220 = pneg %p72
        $region22: #{_forward_resize.1} parent=19 // pred_check_branch
          %222 = sbr.rel (%p220) target = $region24
        $region23: #{_forward_resize.1} parent=19 // pred_region
          %s223 = sld [smem:[#allocation4 + %s31]]
          %s224 = ssub.s32 %s223, 1
          %p225 = scmp.lt.s32.totalorder %s32, %s224
          %s226 = scalar_select %p225, %s32, %s224
          %s227 = smul.u32 16, %s226
          %p228 = scmp.lt.s32.totalorder %s31, 2
          %s229 = scalar_select %p228, %s31, 2
          %p230 = scmp.lt.s32.totalorder %s227, 15
          %s231 = scalar_select %p230, %s227, 15
          %s232 = smul.addr %s229, 32
          %s233 = sadd.s32 %s231, %s232
          %s234 = smul.addr %s233, 8
          %s235 = scalar_lea.vmem %s1, %s234
          %s236 = sld [smem:[#allocation4 + %s31]]
          %s237 = ssub.s32 %s236, 1
          %p238 = scmp.lt.s32.totalorder %s32, %s237
          %s239 = scalar_select %p238, %s32, %s237
          %s240 = smul.u32 16, %s239
        $region24: #{_forward_resize.1} parent=19 // pred_fallthru
          _
        // Predicated region
        $region25: #{_forward_resize.1} parent=19 // pred_check
          %p241 = pneg %p110
        $region26: #{_forward_resize.1} parent=19 // pred_check_branch
          %243 = sbr.rel (%p241) target = $region28
        $region27: #{_forward_resize.1} parent=19 // pred_region
          %s244 = sld [smem:[#allocation4 + %s31]]
          %s245 = ssub.s32 %s244, 1
          %p246 = scmp.lt.s32.totalorder %s32, %s245
          %s247 = scalar_select %p246, %s32, %s245
          %s248 = smul.u32 4, %s30
          %p249 = scmp.lt.s32.totalorder %s31, 2
          %s250 = scalar_select %p249, %s31, 2
          %p251 = scmp.lt.s32.totalorder %s248, 3
          %s252 = scalar_select %p251, %s248, 3
          %p253 = scmp.lt.s32.totalorder %s247, 0
          %s254 = scalar_select %p253, %s247, 0
          %s255 = sadd.s32 %s254, %s252
          %s256 = smul.addr %s250, 4
          %s257 = sadd.s32 %s255, %s256
          %s258 = smul.addr %s257, 8
          %s259 = scalar_lea.vmem %s2, %s258
          %s260 = sld [smem:[#allocation4 + %s31]]
          %s261 = ssub.s32 %s260, 1
          %p262 = scmp.lt.s32.totalorder %s32, %s261
          %s263 = scalar_select %p262, %s32, %s261
          %s264 = smul.u32 4, %s30
        $region28: #{_forward_resize.1} parent=19 // pred_fallthru
          _
        // Predicated region
        $region29: #{_forward_resize.1} parent=19 // pred_check
          %p265 = pneg %p136
        $region30: #{_forward_resize.1} parent=19 // pred_check_branch
          %267 = sbr.rel (%p265) target = $region32
        $region31: #{_forward_resize.1} parent=19 // pred_region
          %p268 = scmp.lt.s32.totalorder %s31, 2
          %s269 = scalar_select %p268, %s31, 2
          %s270 = smul.addr %s269, 2
          %s271 = smul.addr %s270, 8
          %s272 = scalar_lea.vmem %s3, %s271
        $region32: #{_forward_resize.1} parent=19 // pred_fallthru
          _
      $region20: #{_forward_resize.1} parent=5 // pred_fallthru
        _
      %p273 = scmp.le.s32.totalorder 1, %s23
      %p274 = scmp.lt.s32.totalorder %s23, 4
      %p275 = pnand %p273, %p274
      %p276 = pneg %p275
      // Predicated region
      $region33: #{_forward_resize.1} parent=5 // pred_check
        _
      $region34: #{_forward_resize.1} parent=5 // pred_check_branch
        %278 = sbr.rel (%p275) target = $region36
      $region35: #{_forward_resize.1} parent=5 // pred_region
        %s279 = ssub.s32 %s23, 1
        // Predicated region
        $region37: #{_forward_resize.1} parent=35 // pred_check
          %p280 = pneg %p163
        $region38: #{_forward_resize.1} parent=35 // pred_check_branch
          %282 = sbr.rel (%p280) target = $region40
        $region39: #{_forward_resize.1} parent=35 // pred_region
          %284 = dma.done [#allocation7], 16
        $region40: #{_forward_resize.1} parent=35 // pred_fallthru
          _
        %285 = sfence
        %s286 = sld [smem:[#allocation4 + %s34]]
        %s287 = ssub.s32 %s286, 1
        %p288 = scmp.lt.s32.totalorder %s35, %s287
        %s289 = scalar_select %p288, %s35, %s287
        %s290 = smul.u32 16, %s289
        %p291 = scmp.lt.s32.totalorder %s34, 2
        %s292 = scalar_select %p291, %s34, 2
        %p293 = scmp.lt.s32.totalorder %s290, 15
        %s294 = scalar_select %p293, %s290, 15
        %s295 = smul.addr %s292, 32
        %s296 = sadd.s32 %s294, %s295
        %s297 = smul.addr %s296, 8
        %s298 = scalar_lea.vmem %s1, %s297
        %p299 = pneg %p78
        %p300 = pneg %p75
        %s301 = sld [smem:[#allocation4 + %s34]]
        %s302 = ssub.s32 %s301, 1
        %p303 = scmp.lt.s32.totalorder %s35, %s302
        %s304 = scalar_select %p303, %s35, %s302
        %s305 = smul.u32 4, %s33
        %p306 = scmp.lt.s32.totalorder %s34, 2
        %s307 = scalar_select %p306, %s34, 2
        %p308 = scmp.lt.s32.totalorder %s305, 3
        %s309 = scalar_select %p308, %s305, 3
        %p310 = scmp.lt.s32.totalorder %s304, 0
        %s311 = scalar_select %p310, %s304, 0
        %s312 = sadd.s32 %s311, %s309
        %s313 = smul.addr %s307, 4
        %s314 = sadd.s32 %s312, %s313
        %s315 = smul.addr %s314, 8
        %s316 = scalar_lea.vmem %s2, %s315
        %p317 = pneg %p116
        %p318 = pneg %p113
        %p319 = scmp.lt.s32.totalorder %s34, 2
        %s320 = scalar_select %p319, %s34, 2
        %s321 = smul.addr %s320, 2
        %s322 = smul.addr %s321, 8
        %s323 = scalar_lea.vmem %s3, %s322
        %p324 = pneg %p142
        %p325 = pneg %p139
        %p326 = pneg %p163
        %p327 = pneg %p160
        %p328 = pneg %p191
        %p329 = pneg %p188
        %s330 = sand.u32 %s178, 1
        %s331 = scalar_lea.sflag [#allocation6], %s330
        %s332 = sand.u32 %s178, 1
        %s333 = smul.addr %s332, 64
        %s334 = scalar_lea.vmem [#allocation8], %s333
        %s335 = sld [smem:[#allocation4 + %s34]]
        %s336 = ssub.s32 %s335, 1
        %p337 = scmp.lt.s32.totalorder %s35, %s336
        %s338 = scalar_select %p337, %s35, %s336
        %s339 = smul.u32 16, %s338
        %p340 = scmp.lt.s32.totalorder %s34, 2
        %s341 = scalar_select %p340, %s34, 2
        %p342 = scmp.lt.s32.totalorder %s339, 15
        %s343 = scalar_select %p342, %s339, 15
        %s344 = smul.addr %s341, 32
        %s345 = sadd.s32 %s343, %s344
        %s346 = smul.addr %s345, 8
        %s347 = scalar_lea.vmem %s1, %s346
        %s348 = sld [smem:[#allocation4 + %s34]]
        %s349 = ssub.s32 %s348, 1
        %p350 = scmp.lt.s32.totalorder %s35, %s349
        %s351 = scalar_select %p350, %s35, %s349
        %s352 = smul.u32 16, %s351
        %s353 = sld [smem:[#allocation4 + %s34]]
        %s354 = ssub.s32 %s353, 1
        %p355 = scmp.lt.s32.totalorder %s35, %s354
        %s356 = scalar_select %p355, %s35, %s354
        %s357 = smul.u32 4, %s33
        %p358 = scmp.lt.s32.totalorder %s34, 2
        %s359 = scalar_select %p358, %s34, 2
        %p360 = scmp.lt.s32.totalorder %s357, 3
        %s361 = scalar_select %p360, %s357, 3
        %p362 = scmp.lt.s32.totalorder %s356, 0
        %s363 = scalar_select %p362, %s356, 0
        %s364 = sadd.s32 %s363, %s361
        %s365 = smul.addr %s359, 4
        %s366 = sadd.s32 %s364, %s365
        %s367 = smul.addr %s366, 8
        %s368 = scalar_lea.vmem %s2, %s367
        %s369 = sld [smem:[#allocation4 + %s34]]
        %s370 = ssub.s32 %s369, 1
        %p371 = scmp.lt.s32.totalorder %s35, %s370
        %s372 = scalar_select %p371, %s35, %s370
        %s373 = smul.u32 4, %s33
        %p374 = scmp.lt.s32.totalorder %s34, 2
        %s375 = scalar_select %p374, %s34, 2
        %s376 = smul.addr %s375, 2
        %s377 = smul.addr %s376, 8
        %s378 = scalar_lea.vmem %s3, %s377
        %s379 = smul.u32 4, %s33
        %p380 = scmp.eq.s32.totalorder %s35, 0
        // Predicated region
        $region41: #{_forward_resize.1} parent=35 // pred_check
          %p381 = pneg %p380
        $region42: #{_forward_resize.1} parent=35 // pred_check_branch
          %383 = sbr.rel (%p381) target = $region44
        $region43: #{_forward_resize.1} parent=35 // pred_region
          %vm384 = vcmask 130048
          %385 = vst.msk [vmem:[#allocation2] sm:$0xff] %vm384, 0.0
          %386 = vst.msk [vmem:[#allocation2 + $0x8] sm:$0xff] %vm384, 0.0
          %387 = vst.msk [vmem:[#allocation2 + $0x10] sm:$0xff] %vm384, 0.0
          %388 = vst.msk [vmem:[#allocation2 + $0x18] sm:$0xff] %vm384, 0.0
          %389 = vst.msk [vmem:[#allocation2 + $0x20] sm:$0xff] %vm384, 0.0
          %390 = vst.msk [vmem:[#allocation2 + $0x28] sm:$0xff] %vm384, 0.0
          %391 = vst.msk [vmem:[#allocation2 + $0x30] sm:$0xff] %vm384, 0.0
          %392 = vst.msk [vmem:[#allocation2 + $0x38] sm:$0xff] %vm384, 0.0
        $region44: #{_forward_resize.1} parent=35 // pred_fallthru
          _
        %s393 = sld [smem:[#allocation4 + %s34]]
        %p394 = scmp.lt.s32.totalorder %s35, %s393
        // Predicated region
        $region45: #{_forward_resize.1} parent=35 // pred_check
          %p395 = pneg %p394
        $region46: #{_forward_resize.1} parent=35 // pred_check_branch
          %397 = sbr.rel (%p395) target = $region48
        $region47: #{_forward_resize.1} parent=35 // pred_region
          %v398 = vld [vmem:[%s368] sm:$0xff]
          %v399 = vld [vmem:[%s368 + $0x8] sm:$0xff]
          %v400 = vld [vmem:[%s368 + $0x10] sm:$0xff]
          %v401 = vld [vmem:[%s368 + $0x18] sm:$0xff]
          %v402 = vld [vmem:[#allocation2] sm:$0xff]
          %v403 = vld [vmem:[#allocation2 + $0x8] sm:$0xff]
          %v404 = vld [vmem:[#allocation2 + $0x10] sm:$0xff]
          %v405 = vld [vmem:[#allocation2 + $0x18] sm:$0xff]
          %v406 = vld [vmem:[%s347] sm:$0xff]
          %v407 = vld [vmem:[%s347 + $0x8] sm:$0xff]
          %v408 = vld [vmem:[%s347 + $0x10] sm:$0xff]
          %v409 = vld [vmem:[%s347 + $0x18] sm:$0xff]
          %v410 = vld [vmem:[%s347 + $0x20] sm:$0xff]
          %v411 = vld [vmem:[%s347 + $0x28] sm:$0xff]
          %v412 = vld [vmem:[%s347 + $0x30] sm:$0xff]
          %v413 = vld [vmem:[%s347 + $0x38] sm:$0xff]
          %v414 = vld [vmem:[%s347 + $0x40] sm:$0xff]
          %v415 = vld [vmem:[%s347 + $0x48] sm:$0xff]
          %v416 = vld [vmem:[%s347 + $0x50] sm:$0xff]
          %v417 = vld [vmem:[%s347 + $0x58] sm:$0xff]
          %v418 = vld [vmem:[%s347 + $0x60] sm:$0xff]
          %v419 = vld [vmem:[%s347 + $0x68] sm:$0xff]
          %v420 = vld [vmem:[%s347 + $0x70] sm:$0xff]
          %v421 = vld [vmem:[%s347 + $0x78] sm:$0xff]
          %422 = vmatpush.msra.mxu0 %v421
          %423 = vmatpush.msra.mxu0 %v420
          %424 = vmatpush.msra.mxu0 %v419
          %425 = vmatpush.msra.mxu0 %v418
          %426 = vmatpush.msra.mxu0 %v417
          %427 = vmatpush.msra.mxu0 %v416
          %428 = vmatpush.msra.mxu0 %v415
          %429 = vmatpush.msra.mxu0 %v414
          %430 = vmatpush.msra.mxu0 %v413
          %431 = vmatpush.msra.mxu0 %v412
          %432 = vmatpush.msra.mxu0 %v411
          %433 = vmatpush.msra.mxu0 %v410
          %434 = vmatpush.msra.mxu0 %v409
          %435 = vmatpush.msra.mxu0 %v408
          %436 = vmatpush.msra.mxu0 %v407
          %437 = vmatpush.msra.mxu0 %v406
          %438 = vmatmul.f32.gmra.mxu0 %v398
          %v439 = vpop.f32.mrf.mxu0
          %v440 = vadd.f32 0.0, %v439
          %441 = vmatmul.f32.gmra.mxu0 %v399
          %v442 = vpop.f32.mrf.mxu0
          %v443 = vadd.f32 0.0, %v442
          %444 = vmatmul.f32.gmra.mxu0 %v400
          %v445 = vpop.f32.mrf.mxu0
          %v446 = vadd.f32 0.0, %v445
          %447 = vmatmul.f32.gmra.mxu0 %v401
          %v448 = vpop.f32.mrf.mxu0
          %v449 = vadd.f32 0.0, %v448
          %450 = vdwg.mxu0
          %v451 = vadd.f32 %v402, %v440
          %v452 = vadd.f32 %v403, %v443
          %v453 = vadd.f32 %v404, %v446
          %v454 = vadd.f32 %v405, %v449
          %vm455 = vcmask 130048
          %456 = vst.msk [vmem:[#allocation2] sm:$0xff] %vm455, %v451
          %457 = vst.msk [vmem:[#allocation2 + $0x8] sm:$0xff] %vm455, %v452
          %458 = vst.msk [vmem:[#allocation2 + $0x10] sm:$0xff] %vm455, %v453
          %459 = vst.msk [vmem:[#allocation2 + $0x18] sm:$0xff] %vm455, %v454
          %s460 = scalar_lea.vmem [#allocation2], 32
          %v461 = vld [vmem:[%s460] sm:$0xff]
          %v462 = vld [vmem:[%s460 + $0x8] sm:$0xff]
          %v463 = vld [vmem:[%s460 + $0x10] sm:$0xff]
          %v464 = vld [vmem:[%s460 + $0x18] sm:$0xff]
          %s465 = scalar_lea.vmem %s347, 128
          %v466 = vld [vmem:[%s465] sm:$0xff]
          %v467 = vld [vmem:[%s465 + $0x8] sm:$0xff]
          %v468 = vld [vmem:[%s465 + $0x10] sm:$0xff]
          %v469 = vld [vmem:[%s465 + $0x18] sm:$0xff]
          %v470 = vld [vmem:[%s465 + $0x20] sm:$0xff]
          %v471 = vld [vmem:[%s465 + $0x28] sm:$0xff]
          %v472 = vld [vmem:[%s465 + $0x30] sm:$0xff]
          %v473 = vld [vmem:[%s465 + $0x38] sm:$0xff]
          %v474 = vld [vmem:[%s465 + $0x40] sm:$0xff]
          %v475 = vld [vmem:[%s465 + $0x48] sm:$0xff]
          %v476 = vld [vmem:[%s465 + $0x50] sm:$0xff]
          %v477 = vld [vmem:[%s465 + $0x58] sm:$0xff]
          %v478 = vld [vmem:[%s465 + $0x60] sm:$0xff]
          %v479 = vld [vmem:[%s465 + $0x68] sm:$0xff]
          %v480 = vld [vmem:[%s465 + $0x70] sm:$0xff]
          %v481 = vld [vmem:[%s465 + $0x78] sm:$0xff]
          %482 = vmatpush.msra.mxu0 %v481
          %483 = vmatpush.msra.mxu0 %v480
          %484 = vmatpush.msra.mxu0 %v479
          %485 = vmatpush.msra.mxu0 %v478
          %486 = vmatpush.msra.mxu0 %v477
          %487 = vmatpush.msra.mxu0 %v476
          %488 = vmatpush.msra.mxu0 %v475
          %489 = vmatpush.msra.mxu0 %v474
          %490 = vmatpush.msra.mxu0 %v473
          %491 = vmatpush.msra.mxu0 %v472
          %492 = vmatpush.msra.mxu0 %v471
          %493 = vmatpush.msra.mxu0 %v470
          %494 = vmatpush.msra.mxu0 %v469
          %495 = vmatpush.msra.mxu0 %v468
          %496 = vmatpush.msra.mxu0 %v467
          %497 = vmatpush.msra.mxu0 %v466
          %498 = vmatmul.f32.gmra.mxu0 %v398
          %v499 = vpop.f32.mrf.mxu0
          %v500 = vadd.f32 0.0, %v499
          %501 = vmatmul.f32.gmra.mxu0 %v399
          %v502 = vpop.f32.mrf.mxu0
          %v503 = vadd.f32 0.0, %v502
          %504 = vmatmul.f32.gmra.mxu0 %v400
          %v505 = vpop.f32.mrf.mxu0
          %v506 = vadd.f32 0.0, %v505
          %507 = vmatmul.f32.gmra.mxu0 %v401
          %v508 = vpop.f32.mrf.mxu0
          %v509 = vadd.f32 0.0, %v508
          %510 = vdwg.mxu0
          %v511 = vadd.f32 %v461, %v500
          %v512 = vadd.f32 %v462, %v503
          %v513 = vadd.f32 %v463, %v506
          %v514 = vadd.f32 %v464, %v509
          %515 = vst.msk [vmem:[%s460] sm:$0xff] %vm455, %v511
          %516 = vst.msk [vmem:[%s460 + $0x8] sm:$0xff] %vm455, %v512
          %517 = vst.msk [vmem:[%s460 + $0x10] sm:$0xff] %vm455, %v513
          %518 = vst.msk [vmem:[%s460 + $0x18] sm:$0xff] %vm455, %v514
        $region48: #{_forward_resize.1} parent=35 // pred_fallthru
          _
        // Predicated region
        $region49: #{_forward_resize.1} parent=35 // pred_check
          %p519 = pneg %p380
        $region50: #{_forward_resize.1} parent=35 // pred_check_branch
          %521 = sbr.rel (%p519) target = $region52
        $region51: #{_forward_resize.1} parent=35 // pred_region
          %v522 = vld [vmem:[%s378] sm:$0xff]
          %v523 = vld [vmem:[%s378 + $0x8] sm:$0xff]
          %s524 = sld [smem:[#allocation5 + %s34]]
          %v525 = vld [vmem:[#allocation2] sm:$0xff]
          %v526 = vld [vmem:[#allocation2 + $0x8] sm:$0xff]
          %v527 = vld [vmem:[#allocation2 + $0x10] sm:$0xff]
          %v528 = vld [vmem:[#allocation2 + $0x18] sm:$0xff]
          %v529 = vstv %s524
          %vm530 = vcmask 130048
          %v532 = vsel %vm530, %v525, 0
          %v535 = vsel %vm530, %v526, 0
          %v538 = vsel %vm530, %v527, 0
          %v541 = vsel %vm530, %v528, 0
          %543 = vmatpush.msra.mxu0 0.0
          %544 = vmatpush.msra.mxu0 0.0
          %545 = vmatpush.msra.mxu0 0.0
          %546 = vmatpush.msra.mxu0 0.0
          %547 = vmatpush.msra.mxu0 0.0
          %548 = vmatpush.msra.mxu0 0.0
          %549 = vmatpush.msra.mxu0 0.0
          %550 = vmatpush.msra.mxu0 0.0
          %551 = vmatpush.msra.mxu0 0.0
          %552 = vmatpush.msra.mxu0 0.0
          %553 = vmatpush.msra.mxu0 0.0
          %554 = vmatpush.msra.mxu0 0.0
          %555 = vmatpush.msra.mxu0 0.0
          %556 = vmatpush.msra.mxu0 0.0
          %557 = vmatpush.msra.mxu0 %v523
          %558 = vmatpush.msra.mxu0 %v522
          %559 = vmatmul.f32.gmra.mxu0 %v532
          %v560 = vpop.f32.mrf.mxu0
          %v561 = vadd.f32 %v529, %v560
          %562 = vmatmul.f32.gmra.mxu0 %v535
          %v563 = vpop.f32.mrf.mxu0
          %v564 = vadd.f32 %v529, %v563
          %565 = vmatmul.f32.gmra.mxu0 %v538
          %v566 = vpop.f32.mrf.mxu0
          %v567 = vadd.f32 %v529, %v566
          %568 = vmatmul.f32.gmra.mxu0 %v541
          %v569 = vpop.f32.mrf.mxu0
          %v570 = vadd.f32 %v529, %v569
          %571 = vdwg.mxu0
          %vm572 = vcmask 261120
          %573 = vst.msk [vmem:[%s334] sm:$0xff] %vm572, %v561
          %574 = vst.msk [vmem:[%s334 + $0x8] sm:$0xff] %vm572, %v564
          %575 = vst.msk [vmem:[%s334 + $0x10] sm:$0xff] %vm572, %v567
          %576 = vst.msk [vmem:[%s334 + $0x18] sm:$0xff] %vm572, %v570
          %s577 = scalar_lea.vmem [#allocation2], 32
          %v578 = vld [vmem:[%s577] sm:$0xff]
          %v579 = vld [vmem:[%s577 + $0x8] sm:$0xff]
          %v580 = vld [vmem:[%s577 + $0x10] sm:$0xff]
          %v581 = vld [vmem:[%s577 + $0x18] sm:$0xff]
          %v583 = vsel %vm530, %v578, 0
          %v586 = vsel %vm530, %v579, 0
          %v589 = vsel %vm530, %v580, 0
          %v592 = vsel %vm530, %v581, 0
          %594 = vmatpush.msra.mxu0 0.0
          %595 = vmatpush.msra.mxu0 0.0
          %596 = vmatpush.msra.mxu0 0.0
          %597 = vmatpush.msra.mxu0 0.0
          %598 = vmatpush.msra.mxu0 0.0
          %599 = vmatpush.msra.mxu0 0.0
          %600 = vmatpush.msra.mxu0 0.0
          %601 = vmatpush.msra.mxu0 0.0
          %602 = vmatpush.msra.mxu0 0.0
          %603 = vmatpush.msra.mxu0 0.0
          %604 = vmatpush.msra.mxu0 0.0
          %605 = vmatpush.msra.mxu0 0.0
          %606 = vmatpush.msra.mxu0 0.0
          %607 = vmatpush.msra.mxu0 0.0
          %608 = vmatpush.msra.mxu0 %v523
          %609 = vmatpush.msra.mxu0 %v522
          %610 = vmatmul.f32.gmra.mxu0 %v583
          %v611 = vpop.f32.mrf.mxu0
          %v612 = vadd.f32 %v529, %v611
          %613 = vmatmul.f32.gmra.mxu0 %v586
          %v614 = vpop.f32.mrf.mxu0
          %v615 = vadd.f32 %v529, %v614
          %616 = vmatmul.f32.gmra.mxu0 %v589
          %v617 = vpop.f32.mrf.mxu0
          %v618 = vadd.f32 %v529, %v617
          %619 = vmatmul.f32.gmra.mxu0 %v592
          %v620 = vpop.f32.mrf.mxu0
          %v621 = vadd.f32 %v529, %v620
          %622 = vdwg.mxu0
          %s623 = scalar_lea.vmem %s334, 32 [#allocation8]
          %624 = vst.msk [vmem:[%s623] sm:$0xff] %vm572, %v612
          %625 = vst.msk [vmem:[%s623 + $0x8] sm:$0xff] %vm572, %v615
          %626 = vst.msk [vmem:[%s623 + $0x10] sm:$0xff] %vm572, %v618
          %627 = vst.msk [vmem:[%s623 + $0x18] sm:$0xff] %vm572, %v621
        $region52: #{_forward_resize.1} parent=35 // pred_fallthru
          _
        %s628 = sand.u32 %s178, 1
        %s629 = scalar_lea.sflag [#allocation6], %s628
        %s630 = sand.u32 %s178, 1
        %s631 = smul.addr %s630, 64
        %s632 = scalar_lea.vmem [#allocation8], %s631
        // Predicated region
        $region53: #{_forward_resize.1} parent=35 // pred_check
          %p633 = pneg %p188
        $region54: #{_forward_resize.1} parent=35 // pred_check_branch
          %635 = sbr.rel (%p633) target = $region56
        $region55: #{_forward_resize.1} parent=35 // pred_region
          %s636 = smul.u32 4, %s33
          %638 = vsyncadd %s629, 0
          %s639 = smul.addr %s34, 8
          %s640 = sadd.s32 %s636, %s639
          %s641 = smul.addr %s640, 8
          %s642 = scalar_lea.hbm %s5, %s641
          %s643 = sshll.u32 %s632, 4
          %s644 = int_to_ptr.vmem [resolvable:$true] %s643
          %s645 = sshll.u32 %s642, 4
          %s646 = int_to_ptr.hbm [resolvable:$true] %s645
          %651 = dma.vmem_to_hbm [thread:$0]  %s644, 1024, %s646, %s629, 128, 128, 8
        $region56: #{_forward_resize.1} parent=35 // pred_fallthru
          _
      $region36: #{_forward_resize.1} parent=5 // pred_fallthru
        _
      %p652 = scmp.le.s32.totalorder 2, %s23
      // Predicated region
      $region57: #{_forward_resize.1} parent=5 // pred_check
        %p653 = pneg %p652
      $region58: #{_forward_resize.1} parent=5 // pred_check_branch
        %655 = sbr.rel (%p653) target = $region60
      $region59: #{_forward_resize.1} parent=5 // pred_region
        %s656 = ssub.s32 %s23, 2
        // Predicated region
        $region61: #{_forward_resize.1} parent=59 // pred_check
          %p657 = pneg %p194
        $region62: #{_forward_resize.1} parent=59 // pred_check_branch
          %659 = sbr.rel (%p657) target = $region64
        $region63: #{_forward_resize.1} parent=59 // pred_region
          %s660 = sand.u32 %s179, 1
          %s661 = scalar_lea.sflag [#allocation6], %s660
          %s662 = sand.u32 %s179, 1
          %s663 = smul.addr %s662, 64
          %s664 = scalar_lea.vmem [#allocation8], %s663
          %666 = dma.done %s661, 1024
        $region64: #{_forward_resize.1} parent=59 // pred_fallthru
          _
      $region60: #{_forward_resize.1} parent=5 // pred_fallthru
        _
    $region6: #{_forward_resize.1} parent=1 // loop_footer
      %s27 = sadd.s32 1, %s23
    $region7: #{_forward_resize.1} parent=1 // loop_footer_branch
      %22 = sbr.rel target = $region3
    $region8: #{_forward_resize.1} parent=1 // loop_exit
      _
    %667 = vsyncpa [#allocation6], 1
    %s668 = scalar_lea.sflag [#allocation6], 1
    %669 = vsyncpa %s668, 1
    %670 = vsyncpa [#allocation7], 1
    %s671 = scalar_lea.sflag [#allocation7], 1
    %672 = vsyncpa %s671, 1

</llo_original>
